<compile_context>
chip_gen: v5e
topology: v5e:2x2
jax: 0.10.0
libtpu: 0.0.40
codegen_flags: <defaults>
</compile_context>

<pallas_src>
import functools

import numpy as np
import jax
import jax.numpy as jnp
from jax.experimental import pallas as pl
from jax.experimental.pallas import tpu as pltpu

# ---- hyperparameters from super_loss.py -------------------------------------
ALPHA = 5                   # unused (enhanced_penalty=False)
ENHANCED_PENALTY = False
LAM = 0.12                  # unused (enhanced_penalty=False)
NUM_LEVELS = 5              # num_levels_in_an_octave
STARTING_SIGMA = 0.51
RADIUS = 3                  # Gaussian tap radius (covers ~3 sigma_max)


def _sigmas():
    return [STARTING_SIGMA * (2.0 ** (l / NUM_LEVELS)) for l in range(NUM_LEVELS)]


def _gaussian_1d(sigma, radius):
    t = np.arange(-radius, radius + 1, dtype=np.float64)
    w = np.exp(-0.5 * (t / sigma) ** 2)
    return w / w.sum()


def _blur_matrix(size, sigma):
    """(size, size) symmetric banded Toeplitz zero-padded 'same' blur matrix."""
    w = _gaussian_1d(sigma, RADIUS)
    m = np.zeros((size, size), dtype=np.float64)
    for i in range(size):
        for t in range(2 * RADIUS + 1):
            j = i + t - RADIUS
            if 0 <= j < size:
                m[i, j] = w[t]
    return m


def _stacked_row_blur(h):
    """(NUM_LEVELS*h, h): level l's row-blur matrix in rows [l*h, (l+1)*h)."""
    return np.concatenate([_blur_matrix(h, s) for s in _sigmas()],
                          axis=0).astype(np.float32)


def _blockdiag_col_blur(w, planes):
    """(NUM_LEVELS, planes*w, planes*w): block-diag column-blur per level."""
    eye = np.eye(planes, dtype=np.float64)
    mats = [np.kron(eye, _blur_matrix(w, s)) for s in _sigmas()]
    return np.stack(mats, axis=0).astype(np.float32)


# ---- Pallas kernel -----------------------------------------------------------
def _l2_ms_kernel(x_ref, y_ref, bh_ref, bw_ref, o_ref, *, num_levels, h):
    # x_ref/y_ref : (h, pw)     -- P planes lane-stacked side by side
    # bh_ref      : (L*h, h)    -- 5 row-blur matrices stacked along M
    # bw_ref      : (L, pw, pw) -- block-diagonal column-blur per level
    # o_ref       : (8, 128)    -- this block's partial-sum tile
    d = x_ref[...] - y_ref[...]                                   # f32 (h, pw)
    pw = d.shape[1]

    # Left blur for all 5 levels in one MXU matmul: (5h, h) @ (h, pw).
    bd = jnp.dot(bh_ref[...], d, preferred_element_type=jnp.float32)

    acc = None
    for l in range(num_levels):                                   # unrolled
        r = jnp.dot(bd[l * h:(l + 1) * h, :], bw_ref[l],
                    preferred_element_type=jnp.float32)           # (h, pw)
        sq = r * r
        acc = sq if acc is None else acc + sq

    # Reduce (h, pw) -> (8, 128) partial-sum tile with plain vreg adds; the
    # cross-lane reduction and 1/n_total scaling happen once in the wrapper.
    if h % 8 == 0 and pw % 128 == 0:
        tile = jnp.zeros((8, 128), dtype=jnp.float32)
        for rg in range(h // 8):
            for cg in range(pw // 128):
                tile = tile + acc[rg * 8:(rg + 1) * 8, cg * 128:(cg + 1) * 128]
    else:
        # odd shapes: full reduce, spread evenly so the wrapper sum recovers it
        tile = jnp.full((8, 128), jnp.sum(acc) * jnp.float32(1.0 / 1024.0),
                        dtype=jnp.float32)
    o_ref[...] = tile


def _choose_planes_per_block(nc, w):
    """Pick how many planes to lane-stack per grid step (P*W lane width)."""
    if w % 128 == 0:
        return 1                      # a single plane already fills the lanes
    if 128 % w == 0 and nc * w >= 128:
        return 128 // w               # stack planes to exactly 128 lanes
    return nc                         # odd width: one full-width block


def l2_ms(x, y):
    """Multi-scale Gaussian L2 loss. x, y: NCHW float32. Returns scalar f32."""
    N, C, H, W = x.shape
    nc = N * C
    n_total = float(N * C * H * W)

    p = _choose_planes_per_block(nc, W)
    num_blocks = -(-nc // p)
    nc_pad = num_blocks * p
    pw = p * W

    xf = x.reshape(nc, H, W).astype(jnp.float32)
    yf = y.reshape(nc, H, W).astype(jnp.float32)
    if nc_pad != nc:
        pad = ((0, nc_pad - nc), (0, 0), (0, 0))
        xf = jnp.pad(xf, pad)         # zero planes contribute 0 to the loss
        yf = jnp.pad(yf, pad)

    # Layout plumbing (wrapper-side): lane-stack planes -> (H, nc_pad*W).
    xs = xf.transpose(1, 0, 2).reshape(H, nc_pad * W)
    ys = yf.transpose(1, 0, 2).reshape(H, nc_pad * W)

    bh = jnp.asarray(_stacked_row_blur(H))           # (L*H, H)
    bw = jnp.asarray(_blockdiag_col_blur(W, p))      # (L, pw, pw)

    kernel = functools.partial(_l2_ms_kernel, num_levels=NUM_LEVELS, h=H)

    partials = pl.pallas_call(
        kernel,
        out_shape=jax.ShapeDtypeStruct((num_blocks * 8, 128), jnp.float32),
        grid_spec=pltpu.PrefetchScalarGridSpec(
            num_scalar_prefetch=0,
            grid=(num_blocks,),
            in_specs=[
                pl.BlockSpec((H, pw), lambda i: (0, i)),
                pl.BlockSpec((H, pw), lambda i: (0, i)),
                pl.BlockSpec((NUM_LEVELS * H, H), lambda i: (0, 0)),
                pl.BlockSpec((NUM_LEVELS, pw, pw), lambda i: (0, 0, 0)),
            ],
            out_specs=pl.BlockSpec((8, 128), lambda i: (i, 0)),
        ),
        compiler_params=pltpu.CompilerParams(
            dimension_semantics=("parallel",)),
    )(xs, ys, bh, bw)

    # Final pairwise-style reduction + MSE normalization (each level's MSELoss
    # is a mean over N*C*H*W elements; levels are summed).
    return jnp.sum(partials) * jnp.float32(1.0 / n_total)


# ---- pure-JAX reference (for a correctness check) ----------------------------
def l2_ms_ref(x, y):
    N, C, H, W = x.shape
    xf = x.reshape(N * C, H, W).astype(jnp.float32)
    yf = y.reshape(N * C, H, W).astype(jnp.float32)
    total = jnp.float32(0.0)
    for s in _sigmas():
        BH = jnp.asarray(_blur_matrix(H, s).astype(np.float32))
        BW = jnp.asarray(_blur_matrix(W, s).astype(np.float32))
        bx = jnp.einsum("ij,njk,kl->nil", BH, xf, BW)
        by = jnp.einsum("ij,njk,kl->nil", BH, yf, BW)
        total = total + jnp.mean((bx - by) ** 2)
    return total


if __name__ == "__main__":
    key = jax.random.PRNGKey(0)
    kx, ky = jax.random.split(key)
    x = jax.random.normal(kx, (2, 4, 16, 16), dtype=jnp.float32)
    y = jax.random.normal(ky, (2, 4, 16, 16), dtype=jnp.float32)

    loss = jax.block_until_ready(l2_ms(x, y))
    ref = jax.block_until_ready(l2_ms_ref(x, y))

    np.testing.assert_allclose(np.asarray(loss), np.asarray(ref),
                               rtol=1e-4, atol=1e-6)
    print("KERNEL_OK")
</pallas_src>

<mosaic_0001>
module attributes {stable_mosaic.version = 11 : i64} {
  func.func @_l2_ms_kernel(%arg0: i32, %arg1: memref<16x128xf32, #tpu.memory_space<vmem>>, %arg2: memref<16x128xf32, #tpu.memory_space<vmem>>, %arg3: memref<80x16xf32, #tpu.memory_space<vmem>>, %arg4: memref<5x128x128xf32, #tpu.memory_space<vmem>>, %arg5: memref<8x128xf32, #tpu.memory_space<vmem>>) attributes {dimension_semantics = [#tpu.dimension_semantics<parallel>], iteration_bounds = array<i64: 1>, scalar_prefetch = 0 : i64, scratch_operands = 0 : i64, tpu.core_type = #tpu.core_type<tc>, window_params = [{transform_indices = @transform_0, window_bounds = array<i64: 16, 128>}, {transform_indices = @transform_1, window_bounds = array<i64: 16, 128>}, {pipeline_mode = #tpu.pipeline_mode<synchronous>, transform_indices = @transform_2, window_bounds = array<i64: 80, 16>}, {pipeline_mode = #tpu.pipeline_mode<synchronous>, transform_indices = @transform_3, window_bounds = array<i64: 5, 128, 128>}, {transform_indices = @transform_4, window_bounds = array<i64: 8, 128>}]} {
    %c0 = arith.constant 0 : index
    %c0_0 = arith.constant 0 : index
    %0 = vector.load %arg1[%c0, %c0_0] : memref<16x128xf32, #tpu.memory_space<vmem>>, vector<16x128xf32>
    %c0_1 = arith.constant 0 : index
    %c0_2 = arith.constant 0 : index
    %1 = vector.load %arg2[%c0_1, %c0_2] : memref<16x128xf32, #tpu.memory_space<vmem>>, vector<16x128xf32>
    %2 = arith.subf %0, %1 : vector<16x128xf32>
    %c0_3 = arith.constant 0 : index
    %c0_4 = arith.constant 0 : index
    %3 = vector.load %arg3[%c0_3, %c0_4] : memref<80x16xf32, #tpu.memory_space<vmem>>, vector<80x16xf32>
    %cst = arith.constant dense<0.000000e+00> : vector<80x128xf32>
    %4 = tpu.matmul %3, %2, %cst {dimension_numbers = #tpu.dot_dimension_numbers<[1], [0], [0], [1], [0, 0, 1, 1], [], []>} : vector<80x16xf32>, vector<16x128xf32>, vector<80x128xf32> -> vector<80x128xf32>
    %5 = vector.extract_strided_slice %4 {offsets = [0, 0], sizes = [16, 128], strides = [1, 1]} : vector<80x128xf32> to vector<16x128xf32>
    %c0_5 = arith.constant 0 : index
    %c0_6 = arith.constant 0 : index
    %c0_7 = arith.constant 0 : index
    %6 = vector.load %arg4[%c0_5, %c0_6, %c0_7] : memref<5x128x128xf32, #tpu.memory_space<vmem>>, vector<1x128x128xf32>
    %7 = vector.shape_cast %6 : vector<1x128x128xf32> to vector<128x128xf32>
    %cst_8 = arith.constant dense<0.000000e+00> : vector<16x128xf32>
    %8 = tpu.matmul %5, %7, %cst_8 {dimension_numbers = #tpu.dot_dimension_numbers<[1], [0], [0], [1], [0, 0, 1, 1], [], []>} : vector<16x128xf32>, vector<128x128xf32>, vector<16x128xf32> -> vector<16x128xf32>
    %9 = arith.mulf %8, %8 : vector<16x128xf32>
    %10 = vector.extract_strided_slice %4 {offsets = [16, 0], sizes = [16, 128], strides = [1, 1]} : vector<80x128xf32> to vector<16x128xf32>
    %c1 = arith.constant 1 : index
    %c0_9 = arith.constant 0 : index
    %c0_10 = arith.constant 0 : index
    %11 = vector.load %arg4[%c1, %c0_9, %c0_10] : memref<5x128x128xf32, #tpu.memory_space<vmem>>, vector<1x128x128xf32>
    %12 = vector.shape_cast %11 : vector<1x128x128xf32> to vector<128x128xf32>
    %cst_11 = arith.constant dense<0.000000e+00> : vector<16x128xf32>
    %13 = tpu.matmul %10, %12, %cst_11 {dimension_numbers = #tpu.dot_dimension_numbers<[1], [0], [0], [1], [0, 0, 1, 1], [], []>} : vector<16x128xf32>, vector<128x128xf32>, vector<16x128xf32> -> vector<16x128xf32>
    %14 = arith.mulf %13, %13 : vector<16x128xf32>
    %15 = arith.addf %9, %14 : vector<16x128xf32>
    %16 = vector.extract_strided_slice %4 {offsets = [32, 0], sizes = [16, 128], strides = [1, 1]} : vector<80x128xf32> to vector<16x128xf32>
    %c2 = arith.constant 2 : index
    %c0_12 = arith.constant 0 : index
    %c0_13 = arith.constant 0 : index
    %17 = vector.load %arg4[%c2, %c0_12, %c0_13] : memref<5x128x128xf32, #tpu.memory_space<vmem>>, vector<1x128x128xf32>
    %18 = vector.shape_cast %17 : vector<1x128x128xf32> to vector<128x128xf32>
    %cst_14 = arith.constant dense<0.000000e+00> : vector<16x128xf32>
    %19 = tpu.matmul %16, %18, %cst_14 {dimension_numbers = #tpu.dot_dimension_numbers<[1], [0], [0], [1], [0, 0, 1, 1], [], []>} : vector<16x128xf32>, vector<128x128xf32>, vector<16x128xf32> -> vector<16x128xf32>
    %20 = arith.mulf %19, %19 : vector<16x128xf32>
    %21 = arith.addf %15, %20 : vector<16x128xf32>
    %22 = vector.extract_strided_slice %4 {offsets = [48, 0], sizes = [16, 128], strides = [1, 1]} : vector<80x128xf32> to vector<16x128xf32>
    %c3 = arith.constant 3 : index
    %c0_15 = arith.constant 0 : index
    %c0_16 = arith.constant 0 : index
    %23 = vector.load %arg4[%c3, %c0_15, %c0_16] : memref<5x128x128xf32, #tpu.memory_space<vmem>>, vector<1x128x128xf32>
    %24 = vector.shape_cast %23 : vector<1x128x128xf32> to vector<128x128xf32>
    %cst_17 = arith.constant dense<0.000000e+00> : vector<16x128xf32>
    %25 = tpu.matmul %22, %24, %cst_17 {dimension_numbers = #tpu.dot_dimension_numbers<[1], [0], [0], [1], [0, 0, 1, 1], [], []>} : vector<16x128xf32>, vector<128x128xf32>, vector<16x128xf32> -> vector<16x128xf32>
    %26 = arith.mulf %25, %25 : vector<16x128xf32>
    %27 = arith.addf %21, %26 : vector<16x128xf32>
    %28 = vector.extract_strided_slice %4 {offsets = [64, 0], sizes = [16, 128], strides = [1, 1]} : vector<80x128xf32> to vector<16x128xf32>
    %c4 = arith.constant 4 : index
    %c0_18 = arith.constant 0 : index
    %c0_19 = arith.constant 0 : index
    %29 = vector.load %arg4[%c4, %c0_18, %c0_19] : memref<5x128x128xf32, #tpu.memory_space<vmem>>, vector<1x128x128xf32>
    %30 = vector.shape_cast %29 : vector<1x128x128xf32> to vector<128x128xf32>
    %cst_20 = arith.constant dense<0.000000e+00> : vector<16x128xf32>
    %31 = tpu.matmul %28, %30, %cst_20 {dimension_numbers = #tpu.dot_dimension_numbers<[1], [0], [0], [1], [0, 0, 1, 1], [], []>} : vector<16x128xf32>, vector<128x128xf32>, vector<16x128xf32> -> vector<16x128xf32>
    %32 = arith.mulf %31, %31 : vector<16x128xf32>
    %33 = arith.addf %27, %32 : vector<16x128xf32>
    %cst_21 = arith.constant 0.000000e+00 : f32
    %34 = vector.broadcast %cst_21 : f32 to vector<8x128xf32>
    %35 = vector.extract_strided_slice %33 {offsets = [0, 0], sizes = [8, 128], strides = [1, 1]} : vector<16x128xf32> to vector<8x128xf32>
    %36 = arith.addf %34, %35 : vector<8x128xf32>
    %37 = vector.extract_strided_slice %33 {offsets = [8, 0], sizes = [8, 128], strides = [1, 1]} : vector<16x128xf32> to vector<8x128xf32>
    %38 = arith.addf %36, %37 : vector<8x128xf32>
    %c0_22 = arith.constant 0 : index
    %c0_23 = arith.constant 0 : index
    %39 = vector.load %arg5[%c0_22, %c0_23] : memref<8x128xf32, #tpu.memory_space<vmem>>, vector<8x128xf32>
    tpu.vector_store %arg5[%c0_22, %c0_23], %38 {strides = array<i32>} : memref<8x128xf32, #tpu.memory_space<vmem>>, vector<8x128xf32>,
    return
  }
  func.func @transform_0(%arg0: i32) -> (i32, i32) {
    %c0_i32 = arith.constant 0 : i32
    %c0_i32_0 = arith.constant 0 : i32
    return %c0_i32, %arg0 : i32, i32
  }
  func.func @transform_1(%arg0: i32) -> (i32, i32) {
    %c0_i32 = arith.constant 0 : i32
    %c0_i32_0 = arith.constant 0 : i32
    return %c0_i32, %arg0 : i32, i32
  }
  func.func @transform_2(%arg0: i32) -> (i32, i32) {
    %c0_i32 = arith.constant 0 : i32
    %c0_i32_0 = arith.constant 0 : i32
    %c0_i32_1 = arith.constant 0 : i32
    return %c0_i32, %c0_i32_0 : i32, i32
  }
  func.func @transform_3(%arg0: i32) -> (i32, i32, i32) {
    %c0_i32 = arith.constant 0 : i32
    %c0_i32_0 = arith.constant 0 : i32
    %c0_i32_1 = arith.constant 0 : i32
    %c0_i32_2 = arith.constant 0 : i32
    return %c0_i32, %c0_i32_0, %c0_i32_1 : i32, i32, i32
  }
  func.func @transform_4(%arg0: i32) -> (i32, i32) {
    %c0_i32 = arith.constant 0 : i32
    %c0_i32_0 = arith.constant 0 : i32
    return %arg0, %c0_i32 : i32, i32
  }
}

</mosaic_0001>

<llo_original>
// kernel: tpu_custom_call.1
$region0: #{tpu_custom_call.1}
  #allocation0 [shape = 'u32[]', space=smem, size = 0x4, offset = 0x4, fixed_abs, tag = 'smem constant byte address 0x4 - core index']
  #allocation1 [shape = 'u32[72,128]{1,0:T(1,128)}', space=vmem, size = 0x9000, scoped, tag = 'internal scratch']
  %s0 = inlined_call_operand.vmem [shape: f32[16,128], index: 0, kind: input, shape index: {}]
  %s1 = inlined_call_operand.vmem [shape: f32[16,128], index: 1, kind: input, shape index: {}]
  %s2 = inlined_call_operand.vmem [shape: f32[80,16], index: 2, kind: input, shape index: {}]
  %s3 = inlined_call_operand.hbm [shape: f32[5,128,128], index: 3, kind: input, shape index: {}]
  %s4 = inlined_call_operand.hbm [shape: f32[8,128], index: 4, kind: output, shape index: {}]
  %s5 = sld [smem:[#allocation0]]
  $region30: #{tpu_custom_call.1} parent=0
    _
  %s7 = ssub.s32 1, %s5
  %s8 = scalar_select 0, %s7, %s5
  $region1: #{tpu_custom_call.1} parent=0
    #allocation2 [shape = 'u8[327680]{0}', space=vmem, size = 0x50000, scoped, tag = 'input window, operand 3, single buffered']
    #allocation3 [shape = 's32[1]{0}', space=sflag, size = 0x4, scoped, tag = 'scoped memory for tpu_custom_call.1']
    #allocation4 [shape = 's32[1]{0}', space=sflag, size = 0x4, scoped, tag = 'scoped memory for tpu_custom_call.1']
    #allocation5 [shape = 'u8[4096]{0}', space=vmem, size = 0x1000, scoped, tag = 'output window, operand 0, single buffered']
    %9 = vsyncpa [#allocation3], 0
    %10 = vsyncpa [#allocation4], 0
    // Predicated region
    $region2: #{tpu_custom_call.1} parent=1 // pred_check
      _
    $region3: #{tpu_custom_call.1} parent=1 // pred_check_branch
      %12 = sbr.rel (0) target = $region5
    $region4: #{tpu_custom_call.1} parent=1 // pred_region
      _
    $region5: #{tpu_custom_call.1} parent=1 // pred_fallthru
      _
    // Predicated region
    $region6: #{tpu_custom_call.1} parent=1 // pred_check
      _
    $region7: #{tpu_custom_call.1} parent=1 // pred_check_branch
      %14 = sbr.rel (0) target = $region9
    $region8: #{tpu_custom_call.1} parent=1 // pred_region
      _
    $region9: #{tpu_custom_call.1} parent=1 // pred_fallthru
      _
    // Predicated region
    $region10: #{tpu_custom_call.1} parent=1 // pred_check
      _
    $region11: #{tpu_custom_call.1} parent=1 // pred_check_branch
      %16 = sbr.rel (0) target = $region13
    $region12: #{tpu_custom_call.1} parent=1 // pred_region
      _
    $region13: #{tpu_custom_call.1} parent=1 // pred_fallthru
      _
    // Predicated region
    $region14: #{tpu_custom_call.1} parent=1 // pred_check
      _
    $region15: #{tpu_custom_call.1} parent=1 // pred_check_branch
      %18 = sbr.rel (0) target = $region17
    $region16: #{tpu_custom_call.1} parent=1 // pred_region
      %20 = vsyncadd [#allocation3], 0
      %s21 = sshll.u32 %s3, 4
      %s22 = int_to_ptr.hbm [resolvable:$true] %s21
      %s23 = sshll.u32 [#allocation2], 4
      %s24 = int_to_ptr.vmem [resolvable:$true] %s23
      %29 = dma.hbm_to_vmem [thread:$0]  %s22, 10240, %s24, [#allocation3], 128, 128, 8
    $region17: #{tpu_custom_call.1} parent=1 // pred_fallthru
      _
    // Predicated region
    $region18: #{tpu_custom_call.1} parent=1 // pred_check
      _
    $region19: #{tpu_custom_call.1} parent=1 // pred_check_branch
      %31 = sbr.rel (0) target = $region21
    $region20: #{tpu_custom_call.1} parent=1 // pred_region
      %33 = dma.done [#allocation3], 10240
    $region21: #{tpu_custom_call.1} parent=1 // pred_fallthru
      _
    %v34 = vld [vmem:[%s0] sm:$0xff]
    %v35 = vld [vmem:[%s0 + $0x8] sm:$0xff]
    %v36 = vld [vmem:[%s1] sm:$0xff]
    %v37 = vld [vmem:[%s1 + $0x8] sm:$0xff]
    %v38 = vsub.f32 %v34, %v36
    %v39 = vsub.f32 %v35, %v37
    %v40 = vld [vmem:[%s2] sm:$0xff]
    %v41 = vld [vmem:[%s2 + $0x8] sm:$0xff]
    %v42 = vld [vmem:[%s2 + $0x10] sm:$0xff]
    %v43 = vld [vmem:[%s2 + $0x18] sm:$0xff]
    %v44 = vld [vmem:[%s2 + $0x20] sm:$0xff]
    %v45 = vld [vmem:[%s2 + $0x28] sm:$0xff]
    %v46 = vld [vmem:[%s2 + $0x30] sm:$0xff]
    %v47 = vld [vmem:[%s2 + $0x38] sm:$0xff]
    %v48 = vld [vmem:[%s2 + $0x40] sm:$0xff]
    %v49 = vld [vmem:[%s2 + $0x48] sm:$0xff]
    %vm50 = vcmask 130048
    %v52 = vsel %vm50, %v40, 0
    %v55 = vsel %vm50, %v41, 0
    %v58 = vsel %vm50, %v42, 0
    %v61 = vsel %vm50, %v43, 0
    %v64 = vsel %vm50, %v44, 0
    %v67 = vsel %vm50, %v45, 0
    %v70 = vsel %vm50, %v46, 0
    %v73 = vsel %vm50, %v47, 0
    %v76 = vsel %vm50, %v48, 0
    %v79 = vsel %vm50, %v49, 0
    %81 = vmatpush.msra.mxu0 0.0
    %82 = vmatpush.msra.mxu0 0.0
    %83 = vmatpush.msra.mxu0 0.0
    %84 = vmatpush.msra.mxu0 0.0
    %85 = vmatpush.msra.mxu0 0.0
    %86 = vmatpush.msra.mxu0 0.0
    %87 = vmatpush.msra.mxu0 0.0
    %88 = vmatpush.msra.mxu0 0.0
    %89 = vmatpush.msra.mxu0 0.0
    %90 = vmatpush.msra.mxu0 0.0
    %91 = vmatpush.msra.mxu0 0.0
    %92 = vmatpush.msra.mxu0 0.0
    %93 = vmatpush.msra.mxu0 0.0
    %94 = vmatpush.msra.mxu0 0.0
    %95 = vmatpush.msra.mxu0 %v39
    %96 = vmatpush.msra.mxu0 %v38
    %97 = vmatmul.f32.gmra.mxu0 %v52
    %v98 = vpop.f32.mrf.mxu0
    %v99 = vadd.f32 0.0, %v98
    %100 = vmatmul.f32.gmra.mxu0 %v55
    %v101 = vpop.f32.mrf.mxu0
    %v102 = vadd.f32 0.0, %v101
    %103 = vmatmul.f32.gmra.mxu0 %v58
    %v104 = vpop.f32.mrf.mxu0
    %v105 = vadd.f32 0.0, %v104
    %106 = vmatmul.f32.gmra.mxu0 %v61
    %v107 = vpop.f32.mrf.mxu0
    %v108 = vadd.f32 0.0, %v107
    %109 = vmatmul.f32.gmra.mxu0 %v64
    %v110 = vpop.f32.mrf.mxu0
    %v111 = vadd.f32 0.0, %v110
    %112 = vmatmul.f32.gmra.mxu0 %v67
    %v113 = vpop.f32.mrf.mxu0
    %v114 = vadd.f32 0.0, %v113
    %115 = vmatmul.f32.gmra.mxu0 %v70
    %v116 = vpop.f32.mrf.mxu0
    %v117 = vadd.f32 0.0, %v116
    %118 = vmatmul.f32.gmra.mxu0 %v73
    %v119 = vpop.f32.mrf.mxu0
    %v120 = vadd.f32 0.0, %v119
    %121 = vmatmul.f32.gmra.mxu0 %v76
    %v122 = vpop.f32.mrf.mxu0
    %v123 = vadd.f32 0.0, %v122
    %124 = vmatmul.f32.gmra.mxu0 %v79
    %v125 = vpop.f32.mrf.mxu0
    %v126 = vadd.f32 0.0, %v125
    %127 = vdwg.mxu0
    %v128 = vld [vmem:[#allocation2] sm:$0xff]
    %v129 = vld [vmem:[#allocation2 + $0x8] sm:$0xff]
    %v130 = vld [vmem:[#allocation2 + $0x10] sm:$0xff]
    %v131 = vld [vmem:[#allocation2 + $0x18] sm:$0xff]
    %v132 = vld [vmem:[#allocation2 + $0x20] sm:$0xff]
    %v133 = vld [vmem:[#allocation2 + $0x28] sm:$0xff]
    %v134 = vld [vmem:[#allocation2 + $0x30] sm:$0xff]
    %v135 = vld [vmem:[#allocation2 + $0x38] sm:$0xff]
    %v136 = vld [vmem:[#allocation2 + $0x40] sm:$0xff]
    %v137 = vld [vmem:[#allocation2 + $0x48] sm:$0xff]
    %v138 = vld [vmem:[#allocation2 + $0x50] sm:$0xff]
    %v139 = vld [vmem:[#allocation2 + $0x58] sm:$0xff]
    %v140 = vld [vmem:[#allocation2 + $0x60] sm:$0xff]
    %v141 = vld [vmem:[#allocation2 + $0x68] sm:$0xff]
    %v142 = vld [vmem:[#allocation2 + $0x70] sm:$0xff]
    %v143 = vld [vmem:[#allocation2 + $0x78] sm:$0xff]
    %144 = vmatpush.msra.mxu0 %v143
    %145 = vmatpush.msra.mxu0 %v142
    %146 = vmatpush.msra.mxu0 %v141
    %147 = vmatpush.msra.mxu0 %v140
    %148 = vmatpush.msra.mxu0 %v139
    %149 = vmatpush.msra.mxu0 %v138
    %150 = vmatpush.msra.mxu0 %v137
    %151 = vmatpush.msra.mxu0 %v136
    %152 = vmatpush.msra.mxu0 %v135
    %153 = vmatpush.msra.mxu0 %v134
    %154 = vmatpush.msra.mxu0 %v133
    %155 = vmatpush.msra.mxu0 %v132
    %156 = vmatpush.msra.mxu0 %v131
    %157 = vmatpush.msra.mxu0 %v130
    %158 = vmatpush.msra.mxu0 %v129
    %159 = vmatpush.msra.mxu0 %v128
    %160 = vmatmul.f32.gmra.mxu0 %v99
    %v161 = vpop.f32.mrf.mxu0
    %v162 = vadd.f32 0.0, %v161
    %163 = vmatmul.f32.gmra.mxu0 %v102
    %v164 = vpop.f32.mrf.mxu0
    %v165 = vadd.f32 0.0, %v164
    %166 = vdwg.mxu0
    %v167 = vmul.f32 %v162, %v162
    %v168 = vmul.f32 %v165, %v165
    %s169 = scalar_lea.vmem [#allocation2], 128
    %v170 = vld [vmem:[%s169] sm:$0xff]
    %v171 = vld [vmem:[%s169 + $0x8] sm:$0xff]
    %v172 = vld [vmem:[%s169 + $0x10] sm:$0xff]
    %v173 = vld [vmem:[%s169 + $0x18] sm:$0xff]
    %v174 = vld [vmem:[%s169 + $0x20] sm:$0xff]
    %v175 = vld [vmem:[%s169 + $0x28] sm:$0xff]
    %v176 = vld [vmem:[%s169 + $0x30] sm:$0xff]
    %v177 = vld [vmem:[%s169 + $0x38] sm:$0xff]
    %v178 = vld [vmem:[%s169 + $0x40] sm:$0xff]
    %v179 = vld [vmem:[%s169 + $0x48] sm:$0xff]
    %v180 = vld [vmem:[%s169 + $0x50] sm:$0xff]
    %v181 = vld [vmem:[%s169 + $0x58] sm:$0xff]
    %v182 = vld [vmem:[%s169 + $0x60] sm:$0xff]
    %v183 = vld [vmem:[%s169 + $0x68] sm:$0xff]
    %v184 = vld [vmem:[%s169 + $0x70] sm:$0xff]
    %v185 = vld [vmem:[%s169 + $0x78] sm:$0xff]
    %186 = vmatpush.msra.mxu0 %v185
    %187 = vmatpush.msra.mxu0 %v184
    %188 = vmatpush.msra.mxu0 %v183
    %189 = vmatpush.msra.mxu0 %v182
    %190 = vmatpush.msra.mxu0 %v181
    %191 = vmatpush.msra.mxu0 %v180
    %192 = vmatpush.msra.mxu0 %v179
    %193 = vmatpush.msra.mxu0 %v178
    %194 = vmatpush.msra.mxu0 %v177
    %195 = vmatpush.msra.mxu0 %v176
    %196 = vmatpush.msra.mxu0 %v175
    %197 = vmatpush.msra.mxu0 %v174
    %198 = vmatpush.msra.mxu0 %v173
    %199 = vmatpush.msra.mxu0 %v172
    %200 = vmatpush.msra.mxu0 %v171
    %201 = vmatpush.msra.mxu0 %v170
    %202 = vmatmul.f32.gmra.mxu0 %v105
    %v203 = vpop.f32.mrf.mxu0
    %v204 = vadd.f32 0.0, %v203
    %205 = vmatmul.f32.gmra.mxu0 %v108
    %v206 = vpop.f32.mrf.mxu0
    %v207 = vadd.f32 0.0, %v206
    %208 = vdwg.mxu0
    %v209 = vmul.f32 %v204, %v204
    %v210 = vmul.f32 %v207, %v207
    %v211 = vadd.f32 %v167, %v209
    %v212 = vadd.f32 %v168, %v210
    %s213 = scalar_lea.vmem [#allocation2], 256
    %v214 = vld [vmem:[%s213] sm:$0xff]
    %v215 = vld [vmem:[%s213 + $0x8] sm:$0xff]
    %v216 = vld [vmem:[%s213 + $0x10] sm:$0xff]
    %v217 = vld [vmem:[%s213 + $0x18] sm:$0xff]
    %v218 = vld [vmem:[%s213 + $0x20] sm:$0xff]
    %v219 = vld [vmem:[%s213 + $0x28] sm:$0xff]
    %v220 = vld [vmem:[%s213 + $0x30] sm:$0xff]
    %v221 = vld [vmem:[%s213 + $0x38] sm:$0xff]
    %v222 = vld [vmem:[%s213 + $0x40] sm:$0xff]
    %v223 = vld [vmem:[%s213 + $0x48] sm:$0xff]
    %v224 = vld [vmem:[%s213 + $0x50] sm:$0xff]
    %v225 = vld [vmem:[%s213 + $0x58] sm:$0xff]
    %v226 = vld [vmem:[%s213 + $0x60] sm:$0xff]
    %v227 = vld [vmem:[%s213 + $0x68] sm:$0xff]
    %v228 = vld [vmem:[%s213 + $0x70] sm:$0xff]
    %v229 = vld [vmem:[%s213 + $0x78] sm:$0xff]
    %230 = vmatpush.msra.mxu0 %v229
    %231 = vmatpush.msra.mxu0 %v228
    %232 = vmatpush.msra.mxu0 %v227
    %233 = vmatpush.msra.mxu0 %v226
    %234 = vmatpush.msra.mxu0 %v225
    %235 = vmatpush.msra.mxu0 %v224
    %236 = vmatpush.msra.mxu0 %v223
    %237 = vmatpush.msra.mxu0 %v222
    %238 = vmatpush.msra.mxu0 %v221
    %239 = vmatpush.msra.mxu0 %v220
    %240 = vmatpush.msra.mxu0 %v219
    %241 = vmatpush.msra.mxu0 %v218
    %242 = vmatpush.msra.mxu0 %v217
    %243 = vmatpush.msra.mxu0 %v216
    %244 = vmatpush.msra.mxu0 %v215
    %245 = vmatpush.msra.mxu0 %v214
    %246 = vmatmul.f32.gmra.mxu0 %v111
    %v247 = vpop.f32.mrf.mxu0
    %v248 = vadd.f32 0.0, %v247
    %249 = vmatmul.f32.gmra.mxu0 %v114
    %v250 = vpop.f32.mrf.mxu0
    %v251 = vadd.f32 0.0, %v250
    %252 = vdwg.mxu0
    %v253 = vmul.f32 %v248, %v248
    %v254 = vmul.f32 %v251, %v251
    %v255 = vadd.f32 %v211, %v253
    %v256 = vadd.f32 %v212, %v254
    %s257 = scalar_lea.vmem [#allocation2], 384
    %v258 = vld [vmem:[%s257] sm:$0xff]
    %v259 = vld [vmem:[%s257 + $0x8] sm:$0xff]
    %v260 = vld [vmem:[%s257 + $0x10] sm:$0xff]
    %v261 = vld [vmem:[%s257 + $0x18] sm:$0xff]
    %v262 = vld [vmem:[%s257 + $0x20] sm:$0xff]
    %v263 = vld [vmem:[%s257 + $0x28] sm:$0xff]
    %v264 = vld [vmem:[%s257 + $0x30] sm:$0xff]
    %v265 = vld [vmem:[%s257 + $0x38] sm:$0xff]
    %v266 = vld [vmem:[%s257 + $0x40] sm:$0xff]
    %v267 = vld [vmem:[%s257 + $0x48] sm:$0xff]
    %v268 = vld [vmem:[%s257 + $0x50] sm:$0xff]
    %v269 = vld [vmem:[%s257 + $0x58] sm:$0xff]
    %v270 = vld [vmem:[%s257 + $0x60] sm:$0xff]
    %v271 = vld [vmem:[%s257 + $0x68] sm:$0xff]
    %v272 = vld [vmem:[%s257 + $0x70] sm:$0xff]
    %v273 = vld [vmem:[%s257 + $0x78] sm:$0xff]
    %274 = vmatpush.msra.mxu0 %v273
    %275 = vmatpush.msra.mxu0 %v272
    %276 = vmatpush.msra.mxu0 %v271
    %277 = vmatpush.msra.mxu0 %v270
    %278 = vmatpush.msra.mxu0 %v269
    %279 = vmatpush.msra.mxu0 %v268
    %280 = vmatpush.msra.mxu0 %v267
    %281 = vmatpush.msra.mxu0 %v266
    %282 = vmatpush.msra.mxu0 %v265
    %283 = vmatpush.msra.mxu0 %v264
    %284 = vmatpush.msra.mxu0 %v263
    %285 = vmatpush.msra.mxu0 %v262
    %286 = vmatpush.msra.mxu0 %v261
    %287 = vmatpush.msra.mxu0 %v260
    %288 = vmatpush.msra.mxu0 %v259
    %289 = vmatpush.msra.mxu0 %v258
    %290 = vmatmul.f32.gmra.mxu0 %v117
    %v291 = vpop.f32.mrf.mxu0
    %v292 = vadd.f32 0.0, %v291
    %293 = vmatmul.f32.gmra.mxu0 %v120
    %v294 = vpop.f32.mrf.mxu0
    %v295 = vadd.f32 0.0, %v294
    %296 = vdwg.mxu0
    %v297 = vmul.f32 %v292, %v292
    %v298 = vmul.f32 %v295, %v295
    %v299 = vadd.f32 %v255, %v297
    %v300 = vadd.f32 %v256, %v298
    %s301 = scalar_lea.vmem [#allocation2], 512
    %v302 = vld [vmem:[%s301] sm:$0xff]
    %v303 = vld [vmem:[%s301 + $0x8] sm:$0xff]
    %v304 = vld [vmem:[%s301 + $0x10] sm:$0xff]
    %v305 = vld [vmem:[%s301 + $0x18] sm:$0xff]
    %v306 = vld [vmem:[%s301 + $0x20] sm:$0xff]
    %v307 = vld [vmem:[%s301 + $0x28] sm:$0xff]
    %v308 = vld [vmem:[%s301 + $0x30] sm:$0xff]
    %v309 = vld [vmem:[%s301 + $0x38] sm:$0xff]
    %v310 = vld [vmem:[%s301 + $0x40] sm:$0xff]
    %v311 = vld [vmem:[%s301 + $0x48] sm:$0xff]
    %v312 = vld [vmem:[%s301 + $0x50] sm:$0xff]
    %v313 = vld [vmem:[%s301 + $0x58] sm:$0xff]
    %v314 = vld [vmem:[%s301 + $0x60] sm:$0xff]
    %v315 = vld [vmem:[%s301 + $0x68] sm:$0xff]
    %v316 = vld [vmem:[%s301 + $0x70] sm:$0xff]
    %v317 = vld [vmem:[%s301 + $0x78] sm:$0xff]
    %318 = vmatpush.msra.mxu0 %v317
    %319 = vmatpush.msra.mxu0 %v316
    %320 = vmatpush.msra.mxu0 %v315
    %321 = vmatpush.msra.mxu0 %v314
    %322 = vmatpush.msra.mxu0 %v313
    %323 = vmatpush.msra.mxu0 %v312
    %324 = vmatpush.msra.mxu0 %v311
    %325 = vmatpush.msra.mxu0 %v310
    %326 = vmatpush.msra.mxu0 %v309
    %327 = vmatpush.msra.mxu0 %v308
    %328 = vmatpush.msra.mxu0 %v307
    %329 = vmatpush.msra.mxu0 %v306
    %330 = vmatpush.msra.mxu0 %v305
    %331 = vmatpush.msra.mxu0 %v304
    %332 = vmatpush.msra.mxu0 %v303
    %333 = vmatpush.msra.mxu0 %v302
    %334 = vmatmul.f32.gmra.mxu0 %v123
    %v335 = vpop.f32.mrf.mxu0
    %v336 = vadd.f32 0.0, %v335
    %337 = vmatmul.f32.gmra.mxu0 %v126
    %v338 = vpop.f32.mrf.mxu0
    %v339 = vadd.f32 0.0, %v338
    %340 = vdwg.mxu0
    %v341 = vmul.f32 %v336, %v336
    %v342 = vmul.f32 %v339, %v339
    %v343 = vadd.f32 %v299, %v341
    %v344 = vadd.f32 %v300, %v342
    %v345 = vadd.f32 %v343, 0.0
    %v346 = vadd.f32 %v345, %v344
    %347 = vst [vmem:[#allocation5] sm:$0xff] %v346
    // Predicated region
    $region22: #{tpu_custom_call.1} parent=1 // pred_check
      _
    $region23: #{tpu_custom_call.1} parent=1 // pred_check_branch
      %349 = sbr.rel (0) target = $region25
    $region24: #{tpu_custom_call.1} parent=1 // pred_region
      %351 = vsyncadd [#allocation4], 0
      %s353 = sshll.u32 [#allocation5], 4
      %s354 = int_to_ptr.vmem [resolvable:$true] %s353
      %s355 = sshll.u32 %s4, 4
      %s356 = int_to_ptr.hbm [resolvable:$true] %s355
      %358 = dma.vmem_to_hbm [thread:$0]  %s354, 128, %s356, [#allocation4]
    $region25: #{tpu_custom_call.1} parent=1 // pred_fallthru
      _
    // Predicated region
    $region26: #{tpu_custom_call.1} parent=1 // pred_check
      _
    $region27: #{tpu_custom_call.1} parent=1 // pred_check_branch
      %360 = sbr.rel (0) target = $region29
    $region28: #{tpu_custom_call.1} parent=1 // pred_region
      %362 = dma.done [#allocation4], 128
    $region29: #{tpu_custom_call.1} parent=1 // pred_fallthru
      _
    %363 = vsyncpa [#allocation3], 1
    %364 = vsyncpa [#allocation4], 1

</llo_original>
